<compile_context>
chip_gen: v5e
topology: v5e:2x2
jax: 0.10.0
libtpu: 0.0.40
codegen_flags: <defaults>
</compile_context>

<pallas_src>
import jax
import jax.numpy as jnp
from jax.experimental import pallas as pl
from jax.experimental.pallas import tpu as pltpu

_LANES = 128
_ROW_MULT = 16                            # tile-row granularity (safe f32 & bf16)
_TILE_BYTES_PER_INPUT = 2 * 1024 * 1024   # ~2 MiB per input buffer (f32 width)
_VMEM_LIMIT_BYTES = 32 * 1024 * 1024      # scoped VMEM limit handed to Mosaic


def _round_up(x: int, m: int) -> int:
    return ((x + m - 1) // m) * m


def _as_2d(x: jax.Array) -> jax.Array:
    """Copy-free 2-D view of x for streaming (no jnp.pad, no relayout)."""
    if x.size % _LANES == 0:
        return x.reshape(-1, _LANES)          # lane-dense view (free reshape)
    return x.reshape(-1, x.shape[-1])          # native trailing dim, no padding


def _jax_flat_sum(elem_fn, arrays) -> jax.Array:
    vals = [a.astype(jnp.float32) for a in arrays]
    return jnp.sum(elem_fn(*vals))


def _make_sum_kernel(elem_fn, n_in, num_tiles, rows_in_last_tile, tile_rows,
                     acc_rows, cols):
    needs_mask = rows_in_last_tile != tile_rows   # compile-time flag

    def _partial(contrib):
        # VALU-only partial reduction: fold groups of 8 rows onto the (8, cols)
        # accumulator block; the single cross-lane reduce happens in the wrapper.
        if acc_rows == 8:
            return contrib.reshape(-1, 8, cols).sum(axis=0)
        # tiny single-tile case where rows is not a multiple of 8
        return contrib.sum(axis=0, keepdims=True)

    def kernel(*refs):
        in_refs = refs[:n_in]
        out_ref = refs[n_in]
        t = pl.program_id(0)

        @pl.when(t == 0)
        def _init():
            out_ref[...] = jnp.zeros_like(out_ref)

        def accumulate(valid_rows):
            vals = [r[...].astype(jnp.float32) for r in in_refs]
            contrib = elem_fn(*vals)                     # (tile_rows, cols) f32
            if valid_rows is not None:
                # Rows of the final block past the array end hold unspecified
                # data; jnp.where discards any NaN/Inf elem_fn produced there.
                row = jax.lax.broadcasted_iota(jnp.int32, contrib.shape, 0)
                contrib = jnp.where(row < valid_rows, contrib, 0.0)
            out_ref[...] += _partial(contrib)

        if needs_mask:
            @pl.when(t == num_tiles - 1)
            def _last_tile():
                accumulate(rows_in_last_tile)

            @pl.when(t != num_tiles - 1)
            def _full_tile():
                accumulate(None)
        else:
            accumulate(None)

    return kernel


def _tiled_flat_sum(elem_fn, arrays, *, tile_bytes=_TILE_BYTES_PER_INPUT):
    """sum over all elements of elem_fn(*arrays) via one streaming Pallas pass."""
    a2d = [_as_2d(a) for a in arrays]
    rows, cols = a2d[0].shape

    lane_cols = _round_up(cols, _LANES)    # lane padding counts toward VMEM use
    bytes_per_row = lane_cols * 4          # budget at f32 width

    if rows * bytes_per_row <= tile_bytes:
        tile_rows, num_tiles = rows, 1     # whole stream fits in one block
    elif tile_bytes // bytes_per_row >= _ROW_MULT:
        tile_rows = (tile_bytes // bytes_per_row) // _ROW_MULT * _ROW_MULT
        num_tiles = int(pl.cdiv(rows, tile_rows))
    else:
        # Even a 16-row stripe blows the per-buffer budget (extremely wide
        # ragged last dim) — keep it in plain JAX rather than risk VMEM OOM.
        return _jax_flat_sum(elem_fn, arrays)

    acc_rows = 8 if tile_rows % 8 == 0 else 1
    rows_in_last = rows - (num_tiles - 1) * tile_rows

    kernel = _make_sum_kernel(elem_fn, len(a2d), num_tiles, rows_in_last,
                              tile_rows, acc_rows, cols)

    out = pl.pallas_call(
        kernel,
        out_shape=jax.ShapeDtypeStruct((acc_rows, cols), jnp.float32),
        grid_spec=pltpu.PrefetchScalarGridSpec(
            num_scalar_prefetch=0,
            grid=(num_tiles,),
            in_specs=[pl.BlockSpec((tile_rows, cols), lambda t: (t, 0))
                      for _ in a2d],
            out_specs=pl.BlockSpec((acc_rows, cols), lambda t: (0, 0)),
        ),
        compiler_params=pltpu.CompilerParams(
            dimension_semantics=("arbitrary",),
            vmem_limit_bytes=_VMEM_LIMIT_BYTES,
        ),
    )(*a2d)

    # single cross-lane/sublane reduce of the tiny accumulator block
    return jnp.sum(out)


def _bce_elem(x, y):
    # numerically-stable BCEWithLogits: max(x,0) - x*y + log1p(exp(-|x|))
    return jnp.maximum(x, 0.0) - x * y + jnp.log1p(jnp.exp(-jnp.abs(x)))


def _neg_entropy_elem(a):
    # per-element a*log(a+1e-8)
    return a * jnp.log(a + 1e-8)


def pretrained_multimodal_loss(
    predictions: jax.Array,               # (B, C) logits
    targets: jax.Array,                   # (B, C) targets in [0, 1]
    attention_weights: jax.Array = None,  # (..., S), softmax over last axis
    fusion_weights: jax.Array = None,     # (B, 2)
    *,
    main_weight: float = 1.0,
    attention_weight: float = 0.1,
    fusion_weight: float = 0.05,
    pallas_min_elems: int = 0,            # raise in production to skip kernel
) -> jax.Array:                           # launch overhead for tiny inputs
    # --- main: BCEWithLogitsLoss(reduction='mean') ----------------------------
    if predictions.size < pallas_min_elems:
        bce_sum = _jax_flat_sum(_bce_elem, [predictions, targets])
    else:
        bce_sum = _tiled_flat_sum(_bce_elem, [predictions, targets])
    total = (main_weight / predictions.size) * bce_sum

    # --- attention-entropy regularizer ----------------------------------------
    if attention_weights is not None and attention_weight > 0:
        n_rows = attention_weights.size // attention_weights.shape[-1]
        if attention_weights.size < pallas_min_elems:
            ent_sum = _jax_flat_sum(_neg_entropy_elem, [attention_weights])
        else:
            ent_sum = _tiled_flat_sum(_neg_entropy_elem, [attention_weights])
        total = total + (attention_weight / n_rows) * ent_sum

    # --- fusion balance: MSE vs [0.6, 0.4] -------------------------------------
    # O(B*2) work — plain JAX (not worth DMA-ing through a kernel launch)
    if fusion_weights is not None and fusion_weight > 0:
        bt = jnp.array([0.6, 0.4], dtype=jnp.float32)
        balance = jnp.mean((fusion_weights.astype(jnp.float32) - bt) ** 2)
        total = total + fusion_weight * balance

    return total


def _reference_loss(predictions, targets, attention_weights, fusion_weights,
                    main_weight=1.0, attention_weight=0.1, fusion_weight=0.05):
    x = predictions.astype(jnp.float32)
    y = targets.astype(jnp.float32)
    bce = jnp.maximum(x, 0.0) - x * y + jnp.log1p(jnp.exp(-jnp.abs(x)))
    total = main_weight * jnp.mean(bce)
    aw = attention_weights.astype(jnp.float32)
    ent = -jnp.sum(aw * jnp.log(aw + 1e-8), axis=-1).mean()
    total = total + attention_weight * (-ent)
    bt = jnp.array([0.6, 0.4], dtype=jnp.float32)
    total = total + fusion_weight * jnp.mean(
        (fusion_weights.astype(jnp.float32) - bt) ** 2)
    return total


if __name__ == "__main__":
    key = jax.random.PRNGKey(0)
    k1, k2, k3, k4 = jax.random.split(key, 4)

    # --- 1. small shapes consistent with the module ---------------------------
    B, C, H, S = 2, 8, 4, 8
    predictions = jax.random.normal(k1, (B, C), dtype=jnp.float32)
    targets = (jax.random.uniform(k2, (B, C)) > 0.5).astype(jnp.float32)
    attention_weights = jax.nn.softmax(jax.random.normal(k3, (B, H, S)), axis=-1)
    fusion_weights = jax.nn.softmax(jax.random.normal(k4, (B, 2)), axis=-1)

    loss_fn = jax.jit(pretrained_multimodal_loss)
    loss = jax.block_until_ready(
        loss_fn(predictions, targets, attention_weights, fusion_weights))
    ref = _reference_loss(predictions, targets, attention_weights, fusion_weights)
    assert bool(jnp.allclose(loss, ref, atol=1e-5, rtol=1e-5)), (loss, ref)

    # --- 2. ragged (non-multiple-of-128) shapes --------------------------------
    B2, C2, H2, S2 = 16, 37, 3, 10
    k5, k6, k7, k8 = jax.random.split(k4, 4)
    p2 = jax.random.normal(k5, (B2, C2), dtype=jnp.float32)
    t2 = (jax.random.uniform(k6, (B2, C2)) > 0.5).astype(jnp.float32)
    a2 = jax.nn.softmax(jax.random.normal(k7, (B2, H2, S2)), axis=-1)
    f2 = jax.nn.softmax(jax.random.normal(k8, (B2, 2)), axis=-1)
    loss2 = jax.block_until_ready(loss_fn(p2, t2, a2, f2))
    ref2 = _reference_loss(p2, t2, a2, f2)
    assert bool(jnp.allclose(loss2, ref2, atol=1e-5, rtol=1e-5)), (loss2, ref2)

    # --- 3. multi-tile + last-tile-mask paths of the reduction kernel ----------
    k9, k10, k11 = jax.random.split(k8, 3)
    p3 = jax.random.normal(k9, (300, 160), dtype=jnp.float32)          # lane-dense view
    t3 = (jax.random.uniform(k10, (300, 160)) > 0.5).astype(jnp.float32)
    a3 = jax.nn.softmax(jax.random.normal(k11, (37, 5, 23)), axis=-1)  # native-cols view

    s_bce = jax.block_until_ready(
        _tiled_flat_sum(_bce_elem, [p3, t3], tile_bytes=32 * 1024))
    s_bce_ref = _jax_flat_sum(_bce_elem, [p3, t3])
    assert bool(jnp.allclose(s_bce, s_bce_ref, rtol=1e-5, atol=1e-4)), (s_bce, s_bce_ref)

    s_ent = jax.block_until_ready(
        _tiled_flat_sum(_neg_entropy_elem, [a3], tile_bytes=16 * 1024))
    s_ent_ref = _jax_flat_sum(_neg_entropy_elem, [a3])
    assert bool(jnp.allclose(s_ent, s_ent_ref, rtol=1e-5, atol=1e-4)), (s_ent, s_ent_ref)

    print("KERNEL_OK")
</pallas_src>

<mosaic_0001>
module attributes {stable_mosaic.version = 11 : i64} {
  func.func @kernel(%arg0: i32, %arg1: memref<2x8xf32, #tpu.memory_space<vmem>>, %arg2: memref<2x8xf32, #tpu.memory_space<vmem>>, %arg3: memref<1x8xf32, #tpu.memory_space<vmem>>) attributes {dimension_semantics = [#tpu.dimension_semantics<arbitrary>], iteration_bounds = array<i64: 1>, scalar_prefetch = 0 : i64, scratch_operands = 0 : i64, tpu.core_type = #tpu.core_type<tc>, window_params = [{transform_indices = @transform_0, window_bounds = array<i64: 2, 8>}, {transform_indices = @transform_1, window_bounds = array<i64: 2, 8>}, {pipeline_mode = #tpu.pipeline_mode<synchronous>, transform_indices = @transform_2, window_bounds = array<i64: 1, 8>}]} {
    %c0_i32 = arith.constant 0 : i32
    %0 = arith.cmpi eq, %arg0, %c0_i32 : i32
    %1 = arith.extui %0 : i1 to i32
    %c0_i32_0 = arith.constant 0 : i32
    %2 = arith.cmpi ne, %1, %c0_i32_0 : i32
    scf.if %2 {
      %cst_10 = arith.constant 0.000000e+00 : f32
      %20 = vector.broadcast %cst_10 : f32 to vector<1x8xf32>
      %c0_11 = arith.constant 0 : index
      %c0_12 = arith.constant 0 : index
      %21 = vector.load %arg3[%c0_11, %c0_12] : memref<1x8xf32, #tpu.memory_space<vmem>>, vector<1x8xf32>
      tpu.vector_store %arg3[%c0_11, %c0_12], %20 {strides = array<i32>} : memref<1x8xf32, #tpu.memory_space<vmem>>, vector<1x8xf32>,
    } else {
    }
    %c0 = arith.constant 0 : index
    %c0_1 = arith.constant 0 : index
    %3 = vector.load %arg1[%c0, %c0_1] : memref<2x8xf32, #tpu.memory_space<vmem>>, vector<2x8xf32>
    %c0_2 = arith.constant 0 : index
    %c0_3 = arith.constant 0 : index
    %4 = vector.load %arg2[%c0_2, %c0_3] : memref<2x8xf32, #tpu.memory_space<vmem>>, vector<2x8xf32>
    %cst = arith.constant 0.000000e+00 : f32
    %5 = vector.broadcast %cst : f32 to vector<2x8xf32>
    %6 = arith.maximumf %3, %5 : vector<2x8xf32>
    %7 = arith.mulf %3, %4 : vector<2x8xf32>
    %8 = arith.subf %6, %7 : vector<2x8xf32>
    %9 = math.absf %3 : vector<2x8xf32>
    %cst_4 = arith.constant 0.000000e+00 : f32
    %10 = vector.broadcast %cst_4 : f32 to vector<2x8xf32>
    %11 = arith.subf %10, %9 : vector<2x8xf32>
    %12 = math.exp %11 : vector<2x8xf32>
    %13 = math.log1p %12 : vector<2x8xf32>
    %14 = arith.addf %8, %13 : vector<2x8xf32>
    %c0_5 = arith.constant 0 : index
    %c0_6 = arith.constant 0 : index
    %15 = vector.load %arg3[%c0_5, %c0_6] : memref<1x8xf32, #tpu.memory_space<vmem>>, vector<1x8xf32>
    %cst_7 = arith.constant dense<0.000000e+00> : vector<8xf32>
    %16 = vector.multi_reduction <add>, %14, %cst_7 [0] : vector<2x8xf32> to vector<8xf32>
    %17 = vector.shape_cast %16 : vector<8xf32> to vector<1x8xf32>
    %18 = arith.addf %15, %17 : vector<1x8xf32>
    %c0_8 = arith.constant 0 : index
    %c0_9 = arith.constant 0 : index
    %19 = vector.load %arg3[%c0_8, %c0_9] : memref<1x8xf32, #tpu.memory_space<vmem>>, vector<1x8xf32>
    tpu.vector_store %arg3[%c0_8, %c0_9], %18 {strides = array<i32>} : memref<1x8xf32, #tpu.memory_space<vmem>>, vector<1x8xf32>,
    return
  }
  func.func @transform_0(%arg0: i32) -> (i32, i32) {
    %c0_i32 = arith.constant 0 : i32
    %c0_i32_0 = arith.constant 0 : i32
    return %arg0, %c0_i32 : i32, i32
  }
  func.func @transform_1(%arg0: i32) -> (i32, i32) {
    %c0_i32 = arith.constant 0 : i32
    %c0_i32_0 = arith.constant 0 : i32
    return %arg0, %c0_i32 : i32, i32
  }
  func.func @transform_2(%arg0: i32) -> (i32, i32) {
    %c0_i32 = arith.constant 0 : i32
    %c0_i32_0 = arith.constant 0 : i32
    %c0_i32_1 = arith.constant 0 : i32
    return %c0_i32, %c0_i32_0 : i32, i32
  }
}

module attributes {stable_mosaic.version = 11 : i64} {
  func.func @kernel(%arg0: i32, %arg1: memref<8x8xf32, #tpu.memory_space<vmem>>, %arg2: memref<8x8xf32, #tpu.memory_space<vmem>>) attributes {dimension_semantics = [#tpu.dimension_semantics<arbitrary>], iteration_bounds = array<i64: 1>, scalar_prefetch = 0 : i64, scratch_operands = 0 : i64, tpu.core_type = #tpu.core_type<tc>, window_params = [{transform_indices = @transform_0, window_bounds = array<i64: 8, 8>}, {pipeline_mode = #tpu.pipeline_mode<synchronous>, transform_indices = @transform_1, window_bounds = array<i64: 8, 8>}]} {
    %c0_i32 = arith.constant 0 : i32
    %0 = arith.cmpi eq, %arg0, %c0_i32 : i32
    %1 = arith.extui %0 : i1 to i32
    %c0_i32_0 = arith.constant 0 : i32
    %2 = arith.cmpi ne, %1, %c0_i32_0 : i32
    scf.if %2 {
      %cst_7 = arith.constant 0.000000e+00 : f32
      %13 = vector.broadcast %cst_7 : f32 to vector<8x8xf32>
      %c0_8 = arith.constant 0 : index
      %c0_9 = arith.constant 0 : index
      %14 = vector.load %arg2[%c0_8, %c0_9] : memref<8x8xf32, #tpu.memory_space<vmem>>, vector<8x8xf32>
      tpu.vector_store %arg2[%c0_8, %c0_9], %13 {strides = array<i32>} : memref<8x8xf32, #tpu.memory_space<vmem>>, vector<8x8xf32>,
    } else {
    }
    %c0 = arith.constant 0 : index
    %c0_1 = arith.constant 0 : index
    %3 = vector.load %arg1[%c0, %c0_1] : memref<8x8xf32, #tpu.memory_space<vmem>>, vector<8x8xf32>
    %cst = arith.constant 9.99999993E-9 : f32
    %4 = vector.broadcast %cst : f32 to vector<8x8xf32>
    %5 = arith.addf %3, %4 : vector<8x8xf32>
    %6 = math.log %5 : vector<8x8xf32>
    %7 = arith.mulf %3, %6 : vector<8x8xf32>
    %c0_2 = arith.constant 0 : index
    %c0_3 = arith.constant 0 : index
    %8 = vector.load %arg2[%c0_2, %c0_3] : memref<8x8xf32, #tpu.memory_space<vmem>>, vector<8x8xf32>
    %9 = vector.shape_cast %7 : vector<8x8xf32> to vector<1x8x8xf32>
    %cst_4 = arith.constant dense<0.000000e+00> : vector<8x8xf32>
    %10 = vector.multi_reduction <add>, %9, %cst_4 [0] : vector<1x8x8xf32> to vector<8x8xf32>
    %11 = arith.addf %8, %10 : vector<8x8xf32>
    %c0_5 = arith.constant 0 : index
    %c0_6 = arith.constant 0 : index
    %12 = vector.load %arg2[%c0_5, %c0_6] : memref<8x8xf32, #tpu.memory_space<vmem>>, vector<8x8xf32>
    tpu.vector_store %arg2[%c0_5, %c0_6], %11 {strides = array<i32>} : memref<8x8xf32, #tpu.memory_space<vmem>>, vector<8x8xf32>,
    return
  }
  func.func @transform_0(%arg0: i32) -> (i32, i32) {
    %c0_i32 = arith.constant 0 : i32
    %c0_i32_0 = arith.constant 0 : i32
    return %arg0, %c0_i32 : i32, i32
  }
  func.func @transform_1(%arg0: i32) -> (i32, i32) {
    %c0_i32 = arith.constant 0 : i32
    %c0_i32_0 = arith.constant 0 : i32
    %c0_i32_1 = arith.constant 0 : i32
    return %c0_i32, %c0_i32_0 : i32, i32
  }
}

</mosaic_0001>

<llo_original>
// kernel: pretrained_multimodal_loss.2
$region0: #{pretrained_multimodal_loss.2}
  #allocation0 [shape = 'u32[]', space=smem, size = 0x4, offset = 0x4, fixed_abs, tag = 'smem constant byte address 0x4 - core index']
  #allocation1 [shape = 'u32[72,128]{1,0:T(1,128)}', space=vmem, size = 0x9000, scoped, tag = 'internal scratch']
  %s0 = inlined_call_operand.vmem [shape: f32[2,8], index: 0, kind: input, shape index: {}]
  %s1 = inlined_call_operand.vmem [shape: f32[2,8], index: 1, kind: input, shape index: {}]
  %s2 = inlined_call_operand.vmem [shape: f32[1,8], index: 2, kind: output, shape index: {}]
  %s3 = sld [smem:[#allocation0]]
  $region22: #{pretrained_multimodal_loss.2} parent=0
    _
  %s5 = ssub.s32 1, %s3
  %s6 = scalar_select 0, %s5, %s3
  // Predicated region
  $region2: #{pretrained_multimodal_loss.2} parent=0 // pred_check
    _
  $region3: #{pretrained_multimodal_loss.2} parent=0 // pred_check_branch
    %8 = sbr.rel (0) target = $region5
  $region4: #{pretrained_multimodal_loss.2} parent=0 // pred_region
    _
  $region5: #{pretrained_multimodal_loss.2} parent=0 // pred_fallthru
    _
  // Predicated region
  $region6: #{pretrained_multimodal_loss.2} parent=0 // pred_check
    _
  $region7: #{pretrained_multimodal_loss.2} parent=0 // pred_check_branch
    %10 = sbr.rel (0) target = $region9
  $region8: #{pretrained_multimodal_loss.2} parent=0 // pred_region
    _
  $region9: #{pretrained_multimodal_loss.2} parent=0 // pred_fallthru
    _
  %p11 = scmp.eq.s32.totalorder 0, 0
  // Predicated region
  $region10: #{pretrained_multimodal_loss.2} parent=0 // pred_check
    %p12 = pneg %p11
  $region11: #{pretrained_multimodal_loss.2} parent=0 // pred_check_branch
    %14 = sbr.rel (%p12) target = $region13
  $region12: #{pretrained_multimodal_loss.2} parent=0 // pred_region
    %vm15 = vcmask 57344
    %16 = vst.msk [vmem:[%s2] sm:$0x1] %vm15, 0.0
  $region13: #{pretrained_multimodal_loss.2} parent=0 // pred_fallthru
    _
  %v17 = vld [vmem:[%s0] sm:$0x3]
  %v18 = vld [vmem:[%s1] sm:$0x3]
  %v19 = vmax.f32 %v17, 0.0
  %v20 = vmul.f32 %v17, %v18
  %v21 = vsub.f32 %v19, %v20
  %v22 = vand.u32 2147483647, %v17
  %v23 = vsub.f32 0.0, %v22
  %v24 = vmul.f32 %v23, 1.442695
  %v25 = vpow.pop %v24
  %v26 = vadd.f32 %v25, 1.0
  %v27 = vlog2.pop %v26
  %v28 = vmul.f32 %v27, 0.6931472
  %v29 = vmul.f32 -0.5, %v25
  %v30 = vadd.f32 %v29, 1.0
  %v31 = vmul.f32 %v30, %v25
  %v32 = vand.u32 2147483647, %v25
  %vm33 = vcmp.lt.f32.partialorder %v32, 0.0004427343
  %v34 = vsel %vm33, %v31, %v28
  %v35 = vadd.f32 %v21, %v34
  %v36 = vld [vmem:[%s2] sm:$0x1]
  %vm37 = vcmask 58368
  %v38 = vsel %vm37, %v35, 0.0
  %v39 = vrot.slane %v38, 4
  %v40 = vadd.f32 %v38, %v39
  %v41 = vrot.slane %v40, 2
  %v42 = vadd.f32 %v40, %v41
  %v43 = vrot.slane %v42, 1
  %v44 = vadd.f32 %v42, %v43
  %v45 = vadd.f32 %v36, %v44
  %vm46 = vcmask 57344
  %47 = vst.msk [vmem:[%s2] sm:$0x1] %vm46, %v45
  // Predicated region
  $region14: #{pretrained_multimodal_loss.2} parent=0 // pred_check
    _
  $region15: #{pretrained_multimodal_loss.2} parent=0 // pred_check_branch
    %49 = sbr.rel (0) target = $region17
  $region16: #{pretrained_multimodal_loss.2} parent=0 // pred_region
    _
  $region17: #{pretrained_multimodal_loss.2} parent=0 // pred_fallthru
    _
  // Predicated region
  $region18: #{pretrained_multimodal_loss.2} parent=0 // pred_check
    _
  $region19: #{pretrained_multimodal_loss.2} parent=0 // pred_check_branch
    %51 = sbr.rel (0) target = $region21
  $region20: #{pretrained_multimodal_loss.2} parent=0 // pred_region
    _
  $region21: #{pretrained_multimodal_loss.2} parent=0 // pred_fallthru
    _

// kernel: pretrained_multimodal_loss.3
$region0: #{pretrained_multimodal_loss.3}
  #allocation0 [shape = 'u32[]', space=smem, size = 0x4, offset = 0x4, fixed_abs, tag = 'smem constant byte address 0x4 - core index']
  #allocation1 [shape = 'u32[72,128]{1,0:T(1,128)}', space=vmem, size = 0x9000, scoped, tag = 'internal scratch']
  %s0 = inlined_call_operand.hbm [shape: f32[8,8], index: 0, kind: input, shape index: {}]
  %s1 = inlined_call_operand.vmem [shape: f32[8,8], index: 1, kind: output, shape index: {}]
  %s2 = sld [smem:[#allocation0]]
  $region22: #{pretrained_multimodal_loss.3} parent=0
    _
  %s4 = ssub.s32 1, %s2
  %s5 = scalar_select 0, %s4, %s2
  $region1: #{pretrained_multimodal_loss.3} parent=0
    #allocation2 [shape = 'u8[4096]{0}', space=vmem, size = 0x1000, scoped, tag = 'input window, operand 0, single buffered']
    #allocation3 [shape = 's32[1]{0}', space=sflag, size = 0x4, scoped, tag = 'scoped memory for pretrained_multimodal_loss.3']
    %6 = vsyncpa [#allocation3], 0
    // Predicated region
    $region2: #{pretrained_multimodal_loss.3} parent=1 // pred_check
      _
    $region3: #{pretrained_multimodal_loss.3} parent=1 // pred_check_branch
      %8 = sbr.rel (0) target = $region5
    $region4: #{pretrained_multimodal_loss.3} parent=1 // pred_region
      %10 = vsyncadd [#allocation3], 0
      %s12 = sshll.u32 %s0, 4
      %s13 = int_to_ptr.hbm [resolvable:$true] %s12
      %s14 = sshll.u32 [#allocation2], 4
      %s15 = int_to_ptr.vmem [resolvable:$true] %s14
      %17 = dma.hbm_to_vmem [thread:$0]  %s13, 128, %s15, [#allocation3]
    $region5: #{pretrained_multimodal_loss.3} parent=1 // pred_fallthru
      _
    // Predicated region
    $region6: #{pretrained_multimodal_loss.3} parent=1 // pred_check
      _
    $region7: #{pretrained_multimodal_loss.3} parent=1 // pred_check_branch
      %19 = sbr.rel (0) target = $region9
    $region8: #{pretrained_multimodal_loss.3} parent=1 // pred_region
      %21 = dma.done [#allocation3], 128
    $region9: #{pretrained_multimodal_loss.3} parent=1 // pred_fallthru
      _
    %p22 = scmp.eq.s32.totalorder 0, 0
    // Predicated region
    $region10: #{pretrained_multimodal_loss.3} parent=1 // pred_check
      %p23 = pneg %p22
    $region11: #{pretrained_multimodal_loss.3} parent=1 // pred_check_branch
      %25 = sbr.rel (%p23) target = $region13
    $region12: #{pretrained_multimodal_loss.3} parent=1 // pred_region
      %vm26 = vcmask 64512
      %27 = vst.msk [vmem:[%s1] sm:$0xff] %vm26, 0.0
    $region13: #{pretrained_multimodal_loss.3} parent=1 // pred_fallthru
      _
    %v28 = vld [vmem:[#allocation2] sm:$0xff]
    %v29 = vadd.f32 %v28, 1e-08
    %v30 = vlog2.pop %v29
    %v31 = vmul.f32 %v30, 0.6931472
    %v32 = vmul.f32 %v28, %v31
    %v33 = vld [vmem:[%s1] sm:$0xff]
    %v34 = vadd.f32 %v32, 0.0
    %v35 = vadd.f32 %v33, %v34
    %vm36 = vcmask 64512
    %37 = vst.msk [vmem:[%s1] sm:$0xff] %vm36, %v35
    // Predicated region
    $region14: #{pretrained_multimodal_loss.3} parent=1 // pred_check
      _
    $region15: #{pretrained_multimodal_loss.3} parent=1 // pred_check_branch
      %39 = sbr.rel (0) target = $region17
    $region16: #{pretrained_multimodal_loss.3} parent=1 // pred_region
      _
    $region17: #{pretrained_multimodal_loss.3} parent=1 // pred_fallthru
      _
    // Predicated region
    $region18: #{pretrained_multimodal_loss.3} parent=1 // pred_check
      _
    $region19: #{pretrained_multimodal_loss.3} parent=1 // pred_check_branch
      %41 = sbr.rel (0) target = $region21
    $region20: #{pretrained_multimodal_loss.3} parent=1 // pred_region
      _
    $region21: #{pretrained_multimodal_loss.3} parent=1 // pred_fallthru
      _
    %42 = vsyncpa [#allocation3], 1

</llo_original>
